<compile_context>
chip_gen: v7x
topology: tpu7x:2x2x1
jax: 0.10.0
libtpu: 0.0.40
codegen_flags: <defaults>
</compile_context>

<pallas_src>
import math

import jax
import jax.numpy as jnp
from jax.experimental import pallas as pl
from jax.experimental.pallas import tpu as pltpu


def _pointwise_conv_kernel(w_ref, x_ref, out_ref):
    # One tile: (C_out_pad, C_in) @ (C_in, TN) on the MXU, f32 accumulation.
    out_ref[...] = jnp.dot(
        w_ref[...], x_ref[...], preferred_element_type=jnp.float32
    ).astype(out_ref.dtype)


def _round_up(x, m):
    return ((x + m - 1) // m) * m


def visual_feature_extractor_head(features, conv_weight, *, max_tn=1024, compute_dtype=None):
    """1x1 Conv2d(1024 -> 20, bias=False) forward via Pallas, in native NCHW layout.

    features:    [B, C_in, H, W]      float32 (backbone output)
    conv_weight: [C_out, C_in, 1, 1]  float32 (PyTorch conv weight layout)
    returns      [B, C_out, H, W]     float32
    """
    b, c_in, h, w = features.shape
    c_out = conv_weight.shape[0]
    hw = h * w

    # NCHW -> (B, C_in, H*W): pure reshape, no data movement (no NHWC transpose).
    x3 = features.reshape(b, c_in, hw)

    # Pad output channels to a full 128-lane width (zero rows of W, sliced off below).
    c_out_pad = _round_up(c_out, 128)
    w_mat = conv_weight.reshape(c_out, c_in)
    w_mat = jnp.pad(w_mat, ((0, c_out_pad - c_out), (0, 0)))

    # Optional bf16 input stream (halves HBM traffic on a bandwidth-bound kernel);
    # MXU accumulation stays f32 via preferred_element_type.
    if compute_dtype is not None:
        x3 = x3.astype(compute_dtype)
        w_mat = w_mat.astype(compute_dtype)

    # Spatial tile: large (up to 1024 columns) and a multiple of 128 lanes. No explicit
    # pad of the activation: the ragged last block (if any) is masked by Pallas and the
    # garbage spatial columns it produces never land in the real output.
    tn = min(max_tn, _round_up(hw, 128))
    num_tn = pl.cdiv(hw, tn)

    in_bytes = jnp.dtype(x3.dtype).itemsize
    cost = pl.CostEstimate(
        flops=2 * b * hw * c_in * c_out_pad,
        transcendentals=0,
        bytes_accessed=in_bytes * (b * c_in * hw + c_out_pad * c_in)
        + 4 * b * c_out_pad * hw,
    )

    out_padded = pl.pallas_call(
        _pointwise_conv_kernel,
        out_shape=jax.ShapeDtypeStruct((b, c_out_pad, hw), jnp.float32),
        grid=(b, num_tn),
        in_specs=[
            # Resident weight block: constant index_map, loaded once, reused every step.
            pl.BlockSpec((c_out_pad, c_in), lambda bi, j: (0, 0)),
            # Activation tile in NCHW: (C_in, TN) columns of image bi (batch dim squeezed).
            pl.BlockSpec((None, c_in, tn), lambda bi, j: (bi, 0, j)),
        ],
        # Output block is already NCHW; lane-dense (TN multiple of 128) unmasked stores.
        out_specs=pl.BlockSpec((None, c_out_pad, tn), lambda bi, j: (bi, 0, j)),
        compiler_params=pltpu.CompilerParams(
            dimension_semantics=("parallel", "parallel"),
            vmem_limit_bytes=32 * 1024 * 1024,
        ),
        cost_estimate=cost,
    )(w_mat, x3)

    # Slice off the zero-padded channels; layout is already [B, C_out, H, W].
    return out_padded[:, :c_out, :].reshape(b, c_out, h, w)


if __name__ == "__main__":
    # Small deterministic problem: B=2 feature maps, 1024 channels (fixed by the conv spec),
    # 16x16 spatial, 20 output channels.
    B, C_IN, C_OUT, H, W = 2, 1024, 20, 16, 16

    key = jax.random.PRNGKey(0)
    k_feat, k_w = jax.random.split(key)

    # Stand-in for the DenseNet121 backbone output (see TODO at top of file).
    features = jax.random.normal(k_feat, (B, C_IN, H, W), dtype=jnp.float32)

    # Conv weight init mirroring PyTorch's default kaiming-uniform bound for a 1x1 conv.
    bound = 1.0 / math.sqrt(C_IN)
    conv_weight = jax.random.uniform(
        k_w, (C_OUT, C_IN, 1, 1), dtype=jnp.float32, minval=-bound, maxval=bound
    )

    out = visual_feature_extractor_head(features, conv_weight)
    out = jax.block_until_ready(out)

    # Plain-JAX reference of the same math (1x1 conv == channel matmul).
    ref = jnp.einsum(
        "bchw,oc->bohw",
        features,
        conv_weight.reshape(C_OUT, C_IN),
        precision=jax.lax.Precision.HIGHEST,
    )
    assert out.shape == (B, C_OUT, H, W)
    # Tolerance accepted explicitly: kernel uses the TPU default matmul precision
    # (f32 in / f32 accumulate on the MXU), reference uses Precision.HIGHEST.
    assert jnp.allclose(out, ref, atol=1e-3, rtol=1e-3), float(
        jnp.max(jnp.abs(out - ref))
    )

    print("KERNEL_OK")
</pallas_src>

<mosaic_0001>
module attributes {stable_mosaic.version = 11 : i64} {
  func.func @_pointwise_conv_kernel(%arg0: i32, %arg1: i32, %arg2: memref<128x1024xf32, #tpu.memory_space<vmem>>, %arg3: memref<1x1024x256xf32, #tpu.memory_space<vmem>>, %arg4: memref<1x128x256xf32, #tpu.memory_space<vmem>>) attributes {dimension_semantics = [#tpu.dimension_semantics<parallel>, #tpu.dimension_semantics<parallel>], iteration_bounds = array<i64: 2, 1>, scalar_prefetch = 0 : i64, scratch_operands = 0 : i64, tpu.core_type = #tpu.core_type<tc>, window_params = [{pipeline_mode = #tpu.pipeline_mode<synchronous>, transform_indices = @transform_0, window_bounds = array<i64: 128, 1024>}, {transform_indices = @transform_1, window_bounds = array<i64: 1, 1024, 256>}, {transform_indices = @transform_2, window_bounds = array<i64: 1, 128, 256>}]} {
    %c0 = arith.constant 0 : index
    %c0_0 = arith.constant 0 : index
    %0 = vector.load %arg2[%c0, %c0_0] : memref<128x1024xf32, #tpu.memory_space<vmem>>, vector<128x1024xf32>
    %c0_1 = arith.constant 0 : index
    %c0_2 = arith.constant 0 : index
    %c0_3 = arith.constant 0 : index
    %1 = vector.load %arg3[%c0_1, %c0_2, %c0_3] : memref<1x1024x256xf32, #tpu.memory_space<vmem>>, vector<1x1024x256xf32>
    %2 = vector.shape_cast %1 : vector<1x1024x256xf32> to vector<1024x256xf32>
    %cst = arith.constant dense<0.000000e+00> : vector<128x256xf32>
    %3 = tpu.matmul %0, %2, %cst {dimension_numbers = #tpu.dot_dimension_numbers<[1], [0], [0], [1], [0, 0, 1, 1], [], []>} : vector<128x1024xf32>, vector<1024x256xf32>, vector<128x256xf32> -> vector<128x256xf32>
    %c0_4 = arith.constant 0 : index
    %c0_5 = arith.constant 0 : index
    %c0_6 = arith.constant 0 : index
    %4 = vector.load %arg4[%c0_4, %c0_5, %c0_6] : memref<1x128x256xf32, #tpu.memory_space<vmem>>, vector<1x128x256xf32>
    %5 = vector.shape_cast %4 : vector<1x128x256xf32> to vector<128x256xf32>
    %6 = vector.shape_cast %3 : vector<128x256xf32> to vector<1x128x256xf32>
    tpu.vector_store %arg4[%c0_4, %c0_5, %c0_6], %6 {strides = array<i32>} : memref<1x128x256xf32, #tpu.memory_space<vmem>>, vector<1x128x256xf32>,
    return
  }
  func.func @transform_0(%arg0: i32, %arg1: i32) -> (i32, i32) {
    %c0_i32 = arith.constant 0 : i32
    %c0_i32_0 = arith.constant 0 : i32
    %c0_i32_1 = arith.constant 0 : i32
    return %c0_i32, %c0_i32_0 : i32, i32
  }
  func.func @transform_1(%arg0: i32, %arg1: i32) -> (i32, i32, i32) {
    %c0_i32 = arith.constant 0 : i32
    %c0_i32_0 = arith.constant 0 : i32
    return %arg0, %c0_i32, %arg1 : i32, i32, i32
  }
  func.func @transform_2(%arg0: i32, %arg1: i32) -> (i32, i32, i32) {
    %c0_i32 = arith.constant 0 : i32
    %c0_i32_0 = arith.constant 0 : i32
    return %arg0, %c0_i32, %arg1 : i32, i32, i32
  }
}

</mosaic_0001>

<llo_original>
// kernel: tpu_custom_call.1
$region0: #{tpu_custom_call.1}
  #allocation0 [shape = 'u32[]', space=smem, size = 0x4, offset = 0x4, fixed_abs, tag = 'smem constant byte address 0x4 - core index']
  #allocation1 [shape = 'u32[144,128]{1,0:T(1,128)}', space=vmem, size = 0x12000, scoped, tag = 'internal scratch']
  %s0 = inlined_call_operand.hbm [shape: f32[128,1024], index: 0, kind: input, shape index: {}]
  %s1 = inlined_call_operand.hbm [shape: f32[2,1024,256], index: 1, kind: input, shape index: {}]
  %s2 = inlined_call_operand.hbm [shape: f32[2,128,256], index: 2, kind: output, shape index: {}]
  %s3 = sld [smem:[#allocation0]]
  $region49: #{tpu_custom_call.1} parent=0
    _
  %s5 = ssub.s32 1, %s3
  %s6 = scalar_select 0, %s5, %s3
  $region1: #{tpu_custom_call.1} parent=0
    #allocation2 [shape = 'u8[524288]{0}', space=vmem, size = 0x80000, scoped, tag = 'input window, operand 0, single buffered']
    #allocation3 [shape = 's32[2]{0}', space=sflag, size = 0x8, scoped, tag = 'scoped memory for tpu_custom_call.1']
    #allocation4 [shape = 's32[2]{0}', space=sflag, size = 0x8, scoped, tag = 'scoped memory for tpu_custom_call.1']
    #allocation5 [shape = 'u8[2097152]{0}', space=vmem, size = 0x200000, scoped, tag = 'input window, operand 1']
    #allocation6 [shape = 's32[2]{0}', space=sflag, size = 0x8, scoped, tag = 'scoped memory for tpu_custom_call.1']
    #allocation7 [shape = 'u8[262144]{0}', space=vmem, size = 0x40000, scoped, tag = 'output window, operand 0']
    %7 = vsyncpa [#allocation3], 0
    %8 = vsyncpa [#allocation6], 0
    %s9 = scalar_lea.sflag [#allocation6], 1
    %10 = vsyncpa %s9, 0
    %11 = vsyncpa [#allocation4], 0
    %s12 = scalar_lea.sflag [#allocation4], 1
    %13 = vsyncpa %s12, 0
    loop: start=0, step=1, limit=4
    $region2: #{tpu_custom_call.1} parent=1 // loop_pre_header
      _
    $region3: #{tpu_custom_call.1} parent=1 // loop_header
      %s15 = sphi 0, %s19
      %p16 = scmp.ge.s32.totalorder %s15, 4
      %s22 = sphi 0, %s34
      %s23 = sphi 0, %s30
      %s24 = sphi 0, %s22
      %s25 = sphi 0, %s23
      %s26 = sphi 0, %s24
      %s27 = sphi 0, %s25
      %s35 = sphi 0, %s35
      %s37 = sphi 0, %s35
      %s38 = sphi 0, %s37
      %s52 = sphi 0, %s38
      %s60 = sphi 0, %s62
      %s63 = sphi 0, %s60
      %s64 = sphi 0, %s63
      %s80 = sphi 0, %s64
      %s88 = sphi 0, %s90
      %s91 = sphi 0, %s88
      %s92 = sphi 0, %s91
      %s108 = sphi 0, %s92
    $region4: #{tpu_custom_call.1} parent=1 // loop_header_branch
      %18 = sbr.rel (%p16) target = $region8
    $region5: #{tpu_custom_call.1} parent=1 // loop_body
      %s20 = ssub.s32 %s15, 1
      %s21 = ssub.s32 %s15, 2
      %s28 = sadd.s32 1, %s23
      %p29 = scmp.ge.s32.totalorder %s28, 1
      %s30 = scalar_select %p29, 0, %s28
      %s31 = sadd.s32 1, %s22
      %s32 = scalar_select %p29, %s31, %s22
      %p33 = scmp.ge.s32.totalorder %s32, 2
      %s34 = scalar_select %p33, 0, %s32
      %s36 = sadd.s32 %s35, 1
      %p39 = scmp.eq.s32.totalorder %s15, 1
      %p40 = scmp.ne.s32.totalorder %s35, %s37
      %p41 = scmp.eq.s32.totalorder %s15, 0
      %p42 = por %p40, %p41
      %p43 = scmp.ne.s32.totalorder %s35, %s37
      %p44 = scmp.eq.s32.totalorder %s20, 1
      %p45 = por %p43, %p44
      %p46 = scmp.ne.s32.totalorder %s37, %s38
      %p47 = scmp.eq.s32.totalorder %s20, 0
      %p48 = por %p46, %p47
      %p49 = scmp.ne.s32.totalorder %s37, %s38
      %p50 = scmp.eq.s32.totalorder %s21, 1
      %p51 = por %p49, %p50
      %p53 = scmp.ne.s32.totalorder %s38, %s52
      %p54 = scmp.eq.s32.totalorder %s21, 0
      %p55 = por %p53, %p54
      %s56 = ssub.s32 %s22, %s34
      %s57 = ssub.s32 %s23, %s30
      %s58 = sor.u32 %s56, %s57
      %p59 = scmp.eq.s32.totalorder %s58, 0
      %s61 = sadd.s32 %s60, 1
      %s62 = scalar_select %p59, %s60, %s61
      %p65 = pneg %p59
      %p66 = scmp.eq.s32.totalorder %s15, 1
      %p67 = por %p65, %p66
      %p68 = scmp.ne.s32.totalorder %s60, %s63
      %p69 = scmp.eq.s32.totalorder %s15, 0
      %p70 = por %p68, %p69
      %p71 = scmp.ne.s32.totalorder %s60, %s63
      %p72 = scmp.eq.s32.totalorder %s20, 1
      %p73 = por %p71, %p72
      %p74 = scmp.ne.s32.totalorder %s63, %s64
      %p75 = scmp.eq.s32.totalorder %s20, 0
      %p76 = por %p74, %p75
      %p77 = scmp.ne.s32.totalorder %s63, %s64
      %p78 = scmp.eq.s32.totalorder %s21, 1
      %p79 = por %p77, %p78
      %p81 = scmp.ne.s32.totalorder %s64, %s80
      %p82 = scmp.eq.s32.totalorder %s21, 0
      %p83 = por %p81, %p82
      %s84 = ssub.s32 %s22, %s34
      %s85 = ssub.s32 %s23, %s30
      %s86 = sor.u32 %s84, %s85
      %p87 = scmp.eq.s32.totalorder %s86, 0
      %s89 = sadd.s32 %s88, 1
      %s90 = scalar_select %p87, %s88, %s89
      %p93 = pneg %p87
      %p94 = scmp.eq.s32.totalorder %s15, 1
      %p95 = por %p93, %p94
      %p96 = scmp.ne.s32.totalorder %s88, %s91
      %p97 = scmp.eq.s32.totalorder %s15, 0
      %p98 = por %p96, %p97
      %p99 = scmp.ne.s32.totalorder %s88, %s91
      %p100 = scmp.eq.s32.totalorder %s20, 1
      %p101 = por %p99, %p100
      %p102 = scmp.ne.s32.totalorder %s91, %s92
      %p103 = scmp.eq.s32.totalorder %s20, 0
      %p104 = por %p102, %p103
      %p105 = scmp.ne.s32.totalorder %s91, %s92
      %p106 = scmp.eq.s32.totalorder %s21, 1
      %p107 = por %p105, %p106
      %p109 = scmp.ne.s32.totalorder %s92, %s108
      %p110 = scmp.eq.s32.totalorder %s21, 0
      %p111 = por %p109, %p110
      %p112 = scmp.le.s32.totalorder 1, %s15
      %p113 = scmp.lt.s32.totalorder %s15, 3
      %p114 = pnand %p112, %p113
      %p115 = pneg %p114
      // Predicated region
      $region9: #{tpu_custom_call.1} parent=5 // pred_check
        _
      $region10: #{tpu_custom_call.1} parent=5 // pred_check_branch
        %117 = sbr.rel (%p114) target = $region12
      $region11: #{tpu_custom_call.1} parent=5 // pred_region
        %s118 = ssub.s32 %s15, 1
        // Predicated region
        $region13: #{tpu_custom_call.1} parent=11 // pred_check
          %p119 = pneg %p48
        $region14: #{tpu_custom_call.1} parent=11 // pred_check_branch
          %121 = sbr.rel (%p119) target = $region16
        $region15: #{tpu_custom_call.1} parent=11 // pred_region
          %s123 = ssub.s32 16384, 16384
          %124 = vsyncadd [#allocation3], %s123
          %s125 = sshll.u32 [#allocation2], 4
          %s126 = int_to_ptr.vmem [resolvable:$true] %s125
          %131 = dma.hbm_to_vmem [thread:$0]  %s0, 16384, %s126, [#allocation3], 1024, 1024, 64
        $region16: #{tpu_custom_call.1} parent=11 // pred_fallthru
          _
      $region12: #{tpu_custom_call.1} parent=5 // pred_fallthru
        _
      %p132 = scmp.lt.s32.totalorder %s15, 2
      // Predicated region
      $region17: #{tpu_custom_call.1} parent=5 // pred_check
        %p133 = pneg %p132
      $region18: #{tpu_custom_call.1} parent=5 // pred_check_branch
        %135 = sbr.rel (%p133) target = $region20
      $region19: #{tpu_custom_call.1} parent=5 // pred_region
        // Predicated region
        $region21: #{tpu_custom_call.1} parent=19 // pred_check
          %p136 = pneg %p70
        $region22: #{tpu_custom_call.1} parent=19 // pred_check_branch
          %138 = sbr.rel (%p136) target = $region24
        $region23: #{tpu_custom_call.1} parent=19 // pred_region
          %s139 = sand.u32 %s60, 1
          %s140 = scalar_lea.sflag [#allocation6], %s139
          %s141 = sand.u32 %s60, 1
          %s142 = smul.addr %s141, 2048
          %s143 = scalar_lea.vmem [#allocation5], %s142
          %s144 = smul.u32 2, %s23
          %s146 = ssub.s32 32768, 32768
          %147 = vsyncadd %s140, %s146
          %s148 = smul.addr %s22, 256
          %s149 = sadd.s32 %s144, %s148
          %s150 = smul.addr %s149, 128
          %s151 = scalar_lea.hbm %s1, %s150
          %s152 = sshll.u32 %s143, 4
          %s153 = int_to_ptr.vmem [resolvable:$true] %s152
          %158 = dma.hbm_to_vmem [thread:$0]  %s151, 32768, %s153, %s140, 256, 256, 16
        $region24: #{tpu_custom_call.1} parent=19 // pred_fallthru
          _
      $region20: #{tpu_custom_call.1} parent=5 // pred_fallthru
        _
      %p159 = scmp.le.s32.totalorder 1, %s15
      %p160 = scmp.lt.s32.totalorder %s15, 3
      %p161 = pnand %p159, %p160
      %p162 = pneg %p161
      // Predicated region
      $region25: #{tpu_custom_call.1} parent=5 // pred_check
        _
      $region26: #{tpu_custom_call.1} parent=5 // pred_check_branch
        %164 = sbr.rel (%p161) target = $region28
      $region27: #{tpu_custom_call.1} parent=5 // pred_region
        %s165 = ssub.s32 %s15, 1
        // Predicated region
        $region29: #{tpu_custom_call.1} parent=27 // pred_check
          %p166 = pneg %p48
        $region30: #{tpu_custom_call.1} parent=27 // pred_check_branch
          %168 = sbr.rel (%p166) target = $region32
        $region31: #{tpu_custom_call.1} parent=27 // pred_region
          %169 = dma.done [#allocation3], 16384
        $region32: #{tpu_custom_call.1} parent=27 // pred_fallthru
          _
        %s170 = sand.u32 %s63, 1
        %s171 = scalar_lea.sflag [#allocation6], %s170
        %s172 = sand.u32 %s63, 1
        %s173 = smul.addr %s172, 2048
        %s174 = scalar_lea.vmem [#allocation5], %s173
        // Predicated region
        $region33: #{tpu_custom_call.1} parent=27 // pred_check
          %p175 = pneg %p76
        $region34: #{tpu_custom_call.1} parent=27 // pred_check_branch
          %177 = sbr.rel (%p175) target = $region36
        $region35: #{tpu_custom_call.1} parent=27 // pred_region
          %178 = dma.done %s171, 32768
        $region36: #{tpu_custom_call.1} parent=27 // pred_fallthru
          _
        %p179 = pneg %p48
        %p180 = pneg %p45
        %s181 = sand.u32 %s63, 1
        %s182 = scalar_lea.sflag [#allocation6], %s181
        %s183 = sand.u32 %s63, 1
        %s184 = smul.addr %s183, 2048
        %s185 = scalar_lea.vmem [#allocation5], %s184
        %p186 = pneg %p76
        %p187 = pneg %p73
        %p188 = pneg %p104
        %p189 = pneg %p101
        %s190 = sand.u32 %s91, 1
        %s191 = scalar_lea.sflag [#allocation4], %s190
        %s192 = sand.u32 %s91, 1
        %s193 = smul.addr %s192, 256
        %s194 = scalar_lea.vmem [#allocation7], %s193
        %s195 = smul.u32 2, %s25
        %s196 = smul.u32 2, %s25
        %v197 = vld [vmem:[#allocation2] sm:$0xff]
        %v198 = vld [vmem:[#allocation2 + $0x8] sm:$0xff]
        %v199 = vld [vmem:[#allocation2 + $0x10] sm:$0xff]
        %v200 = vld [vmem:[#allocation2 + $0x18] sm:$0xff]
        %v201 = vld [vmem:[#allocation2 + $0x20] sm:$0xff]
        %v202 = vld [vmem:[#allocation2 + $0x28] sm:$0xff]
        %v203 = vld [vmem:[#allocation2 + $0x30] sm:$0xff]
        %v204 = vld [vmem:[#allocation2 + $0x38] sm:$0xff]
        %v205 = vld [vmem:[#allocation2 + $0x40] sm:$0xff]
        %v206 = vld [vmem:[#allocation2 + $0x48] sm:$0xff]
        %v207 = vld [vmem:[#allocation2 + $0x50] sm:$0xff]
        %v208 = vld [vmem:[#allocation2 + $0x58] sm:$0xff]
        %v209 = vld [vmem:[#allocation2 + $0x60] sm:$0xff]
        %v210 = vld [vmem:[#allocation2 + $0x68] sm:$0xff]
        %v211 = vld [vmem:[#allocation2 + $0x70] sm:$0xff]
        %v212 = vld [vmem:[#allocation2 + $0x78] sm:$0xff]
        %v213 = vld [vmem:[#allocation2 + $0x80] sm:$0xff]
        %v214 = vld [vmem:[#allocation2 + $0x88] sm:$0xff]
        %v215 = vld [vmem:[#allocation2 + $0x90] sm:$0xff]
        %v216 = vld [vmem:[#allocation2 + $0x98] sm:$0xff]
        %v217 = vld [vmem:[#allocation2 + $0xa0] sm:$0xff]
        %v218 = vld [vmem:[#allocation2 + $0xa8] sm:$0xff]
        %v219 = vld [vmem:[#allocation2 + $0xb0] sm:$0xff]
        %v220 = vld [vmem:[#allocation2 + $0xb8] sm:$0xff]
        %v221 = vld [vmem:[#allocation2 + $0xc0] sm:$0xff]
        %v222 = vld [vmem:[#allocation2 + $0xc8] sm:$0xff]
        %v223 = vld [vmem:[#allocation2 + $0xd0] sm:$0xff]
        %v224 = vld [vmem:[#allocation2 + $0xd8] sm:$0xff]
        %v225 = vld [vmem:[#allocation2 + $0xe0] sm:$0xff]
        %v226 = vld [vmem:[#allocation2 + $0xe8] sm:$0xff]
        %v227 = vld [vmem:[#allocation2 + $0xf0] sm:$0xff]
        %v228 = vld [vmem:[#allocation2 + $0xf8] sm:$0xff]
        %v229 = vld [vmem:[#allocation2 + $0x100] sm:$0xff]
        %v230 = vld [vmem:[#allocation2 + $0x108] sm:$0xff]
        %v231 = vld [vmem:[#allocation2 + $0x110] sm:$0xff]
        %v232 = vld [vmem:[#allocation2 + $0x118] sm:$0xff]
        %v233 = vld [vmem:[#allocation2 + $0x120] sm:$0xff]
        %v234 = vld [vmem:[#allocation2 + $0x128] sm:$0xff]
        %v235 = vld [vmem:[#allocation2 + $0x130] sm:$0xff]
        %v236 = vld [vmem:[#allocation2 + $0x138] sm:$0xff]
        %v237 = vld [vmem:[#allocation2 + $0x140] sm:$0xff]
        %v238 = vld [vmem:[#allocation2 + $0x148] sm:$0xff]
        %v239 = vld [vmem:[#allocation2 + $0x150] sm:$0xff]
        %v240 = vld [vmem:[#allocation2 + $0x158] sm:$0xff]
        %v241 = vld [vmem:[#allocation2 + $0x160] sm:$0xff]
        %v242 = vld [vmem:[#allocation2 + $0x168] sm:$0xff]
        %v243 = vld [vmem:[#allocation2 + $0x170] sm:$0xff]
        %v244 = vld [vmem:[#allocation2 + $0x178] sm:$0xff]
        %v245 = vld [vmem:[#allocation2 + $0x180] sm:$0xff]
        %v246 = vld [vmem:[#allocation2 + $0x188] sm:$0xff]
        %v247 = vld [vmem:[#allocation2 + $0x190] sm:$0xff]
        %v248 = vld [vmem:[#allocation2 + $0x198] sm:$0xff]
        %v249 = vld [vmem:[#allocation2 + $0x1a0] sm:$0xff]
        %v250 = vld [vmem:[#allocation2 + $0x1a8] sm:$0xff]
        %v251 = vld [vmem:[#allocation2 + $0x1b0] sm:$0xff]
        %v252 = vld [vmem:[#allocation2 + $0x1b8] sm:$0xff]
        %v253 = vld [vmem:[#allocation2 + $0x1c0] sm:$0xff]
        %v254 = vld [vmem:[#allocation2 + $0x1c8] sm:$0xff]
        %v255 = vld [vmem:[#allocation2 + $0x1d0] sm:$0xff]
        %v256 = vld [vmem:[#allocation2 + $0x1d8] sm:$0xff]
        %v257 = vld [vmem:[#allocation2 + $0x1e0] sm:$0xff]
        %v258 = vld [vmem:[#allocation2 + $0x1e8] sm:$0xff]
        %v259 = vld [vmem:[#allocation2 + $0x1f0] sm:$0xff]
        %v260 = vld [vmem:[#allocation2 + $0x1f8] sm:$0xff]
        %v261 = vld [vmem:[#allocation2 + $0x200] sm:$0xff]
        %v262 = vld [vmem:[#allocation2 + $0x208] sm:$0xff]
        %v263 = vld [vmem:[#allocation2 + $0x210] sm:$0xff]
        %v264 = vld [vmem:[#allocation2 + $0x218] sm:$0xff]
        %v265 = vld [vmem:[#allocation2 + $0x220] sm:$0xff]
        %v266 = vld [vmem:[#allocation2 + $0x228] sm:$0xff]
        %v267 = vld [vmem:[#allocation2 + $0x230] sm:$0xff]
        %v268 = vld [vmem:[#allocation2 + $0x238] sm:$0xff]
        %v269 = vld [vmem:[#allocation2 + $0x240] sm:$0xff]
        %v270 = vld [vmem:[#allocation2 + $0x248] sm:$0xff]
        %v271 = vld [vmem:[#allocation2 + $0x250] sm:$0xff]
        %v272 = vld [vmem:[#allocation2 + $0x258] sm:$0xff]
        %v273 = vld [vmem:[#allocation2 + $0x260] sm:$0xff]
        %v274 = vld [vmem:[#allocation2 + $0x268] sm:$0xff]
        %v275 = vld [vmem:[#allocation2 + $0x270] sm:$0xff]
        %v276 = vld [vmem:[#allocation2 + $0x278] sm:$0xff]
        %v277 = vld [vmem:[#allocation2 + $0x280] sm:$0xff]
        %v278 = vld [vmem:[#allocation2 + $0x288] sm:$0xff]
        %v279 = vld [vmem:[#allocation2 + $0x290] sm:$0xff]
        %v280 = vld [vmem:[#allocation2 + $0x298] sm:$0xff]
        %v281 = vld [vmem:[#allocation2 + $0x2a0] sm:$0xff]
        %v282 = vld [vmem:[#allocation2 + $0x2a8] sm:$0xff]
        %v283 = vld [vmem:[#allocation2 + $0x2b0] sm:$0xff]
        %v284 = vld [vmem:[#allocation2 + $0x2b8] sm:$0xff]
        %v285 = vld [vmem:[#allocation2 + $0x2c0] sm:$0xff]
        %v286 = vld [vmem:[#allocation2 + $0x2c8] sm:$0xff]
        %v287 = vld [vmem:[#allocation2 + $0x2d0] sm:$0xff]
        %v288 = vld [vmem:[#allocation2 + $0x2d8] sm:$0xff]
        %v289 = vld [vmem:[#allocation2 + $0x2e0] sm:$0xff]
        %v290 = vld [vmem:[#allocation2 + $0x2e8] sm:$0xff]
        %v291 = vld [vmem:[#allocation2 + $0x2f0] sm:$0xff]
        %v292 = vld [vmem:[#allocation2 + $0x2f8] sm:$0xff]
        %v293 = vld [vmem:[#allocation2 + $0x300] sm:$0xff]
        %v294 = vld [vmem:[#allocation2 + $0x308] sm:$0xff]
        %v295 = vld [vmem:[#allocation2 + $0x310] sm:$0xff]
        %v296 = vld [vmem:[#allocation2 + $0x318] sm:$0xff]
        %v297 = vld [vmem:[#allocation2 + $0x320] sm:$0xff]
        %v298 = vld [vmem:[#allocation2 + $0x328] sm:$0xff]
        %v299 = vld [vmem:[#allocation2 + $0x330] sm:$0xff]
        %v300 = vld [vmem:[#allocation2 + $0x338] sm:$0xff]
        %v301 = vld [vmem:[#allocation2 + $0x340] sm:$0xff]
        %v302 = vld [vmem:[#allocation2 + $0x348] sm:$0xff]
        %v303 = vld [vmem:[#allocation2 + $0x350] sm:$0xff]
        %v304 = vld [vmem:[#allocation2 + $0x358] sm:$0xff]
        %v305 = vld [vmem:[#allocation2 + $0x360] sm:$0xff]
        %v306 = vld [vmem:[#allocation2 + $0x368] sm:$0xff]
        %v307 = vld [vmem:[#allocation2 + $0x370] sm:$0xff]
        %v308 = vld [vmem:[#allocation2 + $0x378] sm:$0xff]
        %v309 = vld [vmem:[#allocation2 + $0x380] sm:$0xff]
        %v310 = vld [vmem:[#allocation2 + $0x388] sm:$0xff]
        %v311 = vld [vmem:[#allocation2 + $0x390] sm:$0xff]
        %v312 = vld [vmem:[#allocation2 + $0x398] sm:$0xff]
        %v313 = vld [vmem:[#allocation2 + $0x3a0] sm:$0xff]
        %v314 = vld [vmem:[#allocation2 + $0x3a8] sm:$0xff]
        %v315 = vld [vmem:[#allocation2 + $0x3b0] sm:$0xff]
        %v316 = vld [vmem:[#allocation2 + $0x3b8] sm:$0xff]
        %v317 = vld [vmem:[#allocation2 + $0x3c0] sm:$0xff]
        %v318 = vld [vmem:[#allocation2 + $0x3c8] sm:$0xff]
        %v319 = vld [vmem:[#allocation2 + $0x3d0] sm:$0xff]
        %v320 = vld [vmem:[#allocation2 + $0x3d8] sm:$0xff]
        %v321 = vld [vmem:[#allocation2 + $0x3e0] sm:$0xff]
        %v322 = vld [vmem:[#allocation2 + $0x3e8] sm:$0xff]
        %v323 = vld [vmem:[#allocation2 + $0x3f0] sm:$0xff]
        %v324 = vld [vmem:[#allocation2 + $0x3f8] sm:$0xff]
        %v325 = vld [vmem:[%s174] sm:$0xff]
        %v326 = vld [vmem:[%s174 + $0x8] sm:$0xff]
        %v327 = vld [vmem:[%s174 + $0x10] sm:$0xff]
        %v328 = vld [vmem:[%s174 + $0x18] sm:$0xff]
        %v329 = vld [vmem:[%s174 + $0x20] sm:$0xff]
        %v330 = vld [vmem:[%s174 + $0x28] sm:$0xff]
        %v331 = vld [vmem:[%s174 + $0x30] sm:$0xff]
        %v332 = vld [vmem:[%s174 + $0x38] sm:$0xff]
        %v333 = vld [vmem:[%s174 + $0x40] sm:$0xff]
        %v334 = vld [vmem:[%s174 + $0x48] sm:$0xff]
        %v335 = vld [vmem:[%s174 + $0x50] sm:$0xff]
        %v336 = vld [vmem:[%s174 + $0x58] sm:$0xff]
        %v337 = vld [vmem:[%s174 + $0x60] sm:$0xff]
        %v338 = vld [vmem:[%s174 + $0x68] sm:$0xff]
        %v339 = vld [vmem:[%s174 + $0x70] sm:$0xff]
        %v340 = vld [vmem:[%s174 + $0x78] sm:$0xff]
        %v341 = vld [vmem:[%s174 + $0x80] sm:$0xff]
        %v342 = vld [vmem:[%s174 + $0x88] sm:$0xff]
        %v343 = vld [vmem:[%s174 + $0x90] sm:$0xff]
        %v344 = vld [vmem:[%s174 + $0x98] sm:$0xff]
        %v345 = vld [vmem:[%s174 + $0xa0] sm:$0xff]
        %v346 = vld [vmem:[%s174 + $0xa8] sm:$0xff]
        %v347 = vld [vmem:[%s174 + $0xb0] sm:$0xff]
        %v348 = vld [vmem:[%s174 + $0xb8] sm:$0xff]
        %v349 = vld [vmem:[%s174 + $0xc0] sm:$0xff]
        %v350 = vld [vmem:[%s174 + $0xc8] sm:$0xff]
        %v351 = vld [vmem:[%s174 + $0xd0] sm:$0xff]
        %v352 = vld [vmem:[%s174 + $0xd8] sm:$0xff]
        %v353 = vld [vmem:[%s174 + $0xe0] sm:$0xff]
        %v354 = vld [vmem:[%s174 + $0xe8] sm:$0xff]
        %v355 = vld [vmem:[%s174 + $0xf0] sm:$0xff]
        %v356 = vld [vmem:[%s174 + $0xf8] sm:$0xff]
        %v357 = vld [vmem:[%s174 + $0x100] sm:$0xff]
        %v358 = vld [vmem:[%s174 + $0x108] sm:$0xff]
        %v359 = vld [vmem:[%s174 + $0x110] sm:$0xff]
        %v360 = vld [vmem:[%s174 + $0x118] sm:$0xff]
        %v361 = vld [vmem:[%s174 + $0x120] sm:$0xff]
        %v362 = vld [vmem:[%s174 + $0x128] sm:$0xff]
        %v363 = vld [vmem:[%s174 + $0x130] sm:$0xff]
        %v364 = vld [vmem:[%s174 + $0x138] sm:$0xff]
        %v365 = vld [vmem:[%s174 + $0x140] sm:$0xff]
        %v366 = vld [vmem:[%s174 + $0x148] sm:$0xff]
        %v367 = vld [vmem:[%s174 + $0x150] sm:$0xff]
        %v368 = vld [vmem:[%s174 + $0x158] sm:$0xff]
        %v369 = vld [vmem:[%s174 + $0x160] sm:$0xff]
        %v370 = vld [vmem:[%s174 + $0x168] sm:$0xff]
        %v371 = vld [vmem:[%s174 + $0x170] sm:$0xff]
        %v372 = vld [vmem:[%s174 + $0x178] sm:$0xff]
        %v373 = vld [vmem:[%s174 + $0x180] sm:$0xff]
        %v374 = vld [vmem:[%s174 + $0x188] sm:$0xff]
        %v375 = vld [vmem:[%s174 + $0x190] sm:$0xff]
        %v376 = vld [vmem:[%s174 + $0x198] sm:$0xff]
        %v377 = vld [vmem:[%s174 + $0x1a0] sm:$0xff]
        %v378 = vld [vmem:[%s174 + $0x1a8] sm:$0xff]
        %v379 = vld [vmem:[%s174 + $0x1b0] sm:$0xff]
        %v380 = vld [vmem:[%s174 + $0x1b8] sm:$0xff]
        %v381 = vld [vmem:[%s174 + $0x1c0] sm:$0xff]
        %v382 = vld [vmem:[%s174 + $0x1c8] sm:$0xff]
        %v383 = vld [vmem:[%s174 + $0x1d0] sm:$0xff]
        %v384 = vld [vmem:[%s174 + $0x1d8] sm:$0xff]
        %v385 = vld [vmem:[%s174 + $0x1e0] sm:$0xff]
        %v386 = vld [vmem:[%s174 + $0x1e8] sm:$0xff]
        %v387 = vld [vmem:[%s174 + $0x1f0] sm:$0xff]
        %v388 = vld [vmem:[%s174 + $0x1f8] sm:$0xff]
        %v389 = vld [vmem:[%s174 + $0x200] sm:$0xff]
        %v390 = vld [vmem:[%s174 + $0x208] sm:$0xff]
        %v391 = vld [vmem:[%s174 + $0x210] sm:$0xff]
        %v392 = vld [vmem:[%s174 + $0x218] sm:$0xff]
        %v393 = vld [vmem:[%s174 + $0x220] sm:$0xff]
        %v394 = vld [vmem:[%s174 + $0x228] sm:$0xff]
        %v395 = vld [vmem:[%s174 + $0x230] sm:$0xff]
        %v396 = vld [vmem:[%s174 + $0x238] sm:$0xff]
        %v397 = vld [vmem:[%s174 + $0x240] sm:$0xff]
        %v398 = vld [vmem:[%s174 + $0x248] sm:$0xff]
        %v399 = vld [vmem:[%s174 + $0x250] sm:$0xff]
        %v400 = vld [vmem:[%s174 + $0x258] sm:$0xff]
        %v401 = vld [vmem:[%s174 + $0x260] sm:$0xff]
        %v402 = vld [vmem:[%s174 + $0x268] sm:$0xff]
        %v403 = vld [vmem:[%s174 + $0x270] sm:$0xff]
        %v404 = vld [vmem:[%s174 + $0x278] sm:$0xff]
        %v405 = vld [vmem:[%s174 + $0x280] sm:$0xff]
        %v406 = vld [vmem:[%s174 + $0x288] sm:$0xff]
        %v407 = vld [vmem:[%s174 + $0x290] sm:$0xff]
        %v408 = vld [vmem:[%s174 + $0x298] sm:$0xff]
        %v409 = vld [vmem:[%s174 + $0x2a0] sm:$0xff]
        %v410 = vld [vmem:[%s174 + $0x2a8] sm:$0xff]
        %v411 = vld [vmem:[%s174 + $0x2b0] sm:$0xff]
        %v412 = vld [vmem:[%s174 + $0x2b8] sm:$0xff]
        %v413 = vld [vmem:[%s174 + $0x2c0] sm:$0xff]
        %v414 = vld [vmem:[%s174 + $0x2c8] sm:$0xff]
        %v415 = vld [vmem:[%s174 + $0x2d0] sm:$0xff]
        %v416 = vld [vmem:[%s174 + $0x2d8] sm:$0xff]
        %v417 = vld [vmem:[%s174 + $0x2e0] sm:$0xff]
        %v418 = vld [vmem:[%s174 + $0x2e8] sm:$0xff]
        %v419 = vld [vmem:[%s174 + $0x2f0] sm:$0xff]
        %v420 = vld [vmem:[%s174 + $0x2f8] sm:$0xff]
        %v421 = vld [vmem:[%s174 + $0x300] sm:$0xff]
        %v422 = vld [vmem:[%s174 + $0x308] sm:$0xff]
        %v423 = vld [vmem:[%s174 + $0x310] sm:$0xff]
        %v424 = vld [vmem:[%s174 + $0x318] sm:$0xff]
        %v425 = vld [vmem:[%s174 + $0x320] sm:$0xff]
        %v426 = vld [vmem:[%s174 + $0x328] sm:$0xff]
        %v427 = vld [vmem:[%s174 + $0x330] sm:$0xff]
        %v428 = vld [vmem:[%s174 + $0x338] sm:$0xff]
        %v429 = vld [vmem:[%s174 + $0x340] sm:$0xff]
        %v430 = vld [vmem:[%s174 + $0x348] sm:$0xff]
        %v431 = vld [vmem:[%s174 + $0x350] sm:$0xff]
        %v432 = vld [vmem:[%s174 + $0x358] sm:$0xff]
        %v433 = vld [vmem:[%s174 + $0x360] sm:$0xff]
        %v434 = vld [vmem:[%s174 + $0x368] sm:$0xff]
        %v435 = vld [vmem:[%s174 + $0x370] sm:$0xff]
        %v436 = vld [vmem:[%s174 + $0x378] sm:$0xff]
        %v437 = vld [vmem:[%s174 + $0x380] sm:$0xff]
        %v438 = vld [vmem:[%s174 + $0x388] sm:$0xff]
        %v439 = vld [vmem:[%s174 + $0x390] sm:$0xff]
        %v440 = vld [vmem:[%s174 + $0x398] sm:$0xff]
        %v441 = vld [vmem:[%s174 + $0x3a0] sm:$0xff]
        %v442 = vld [vmem:[%s174 + $0x3a8] sm:$0xff]
        %v443 = vld [vmem:[%s174 + $0x3b0] sm:$0xff]
        %v444 = vld [vmem:[%s174 + $0x3b8] sm:$0xff]
        %v445 = vld [vmem:[%s174 + $0x3c0] sm:$0xff]
        %v446 = vld [vmem:[%s174 + $0x3c8] sm:$0xff]
        %v447 = vld [vmem:[%s174 + $0x3d0] sm:$0xff]
        %v448 = vld [vmem:[%s174 + $0x3d8] sm:$0xff]
        %v449 = vld [vmem:[%s174 + $0x3e0] sm:$0xff]
        %v450 = vld [vmem:[%s174 + $0x3e8] sm:$0xff]
        %v451 = vld [vmem:[%s174 + $0x3f0] sm:$0xff]
        %v452 = vld [vmem:[%s174 + $0x3f8] sm:$0xff]
        %v453 = vld [vmem:[%s174 + $0x400] sm:$0xff]
        %v454 = vld [vmem:[%s174 + $0x408] sm:$0xff]
        %v455 = vld [vmem:[%s174 + $0x410] sm:$0xff]
        %v456 = vld [vmem:[%s174 + $0x418] sm:$0xff]
        %v457 = vld [vmem:[%s174 + $0x420] sm:$0xff]
        %v458 = vld [vmem:[%s174 + $0x428] sm:$0xff]
        %v459 = vld [vmem:[%s174 + $0x430] sm:$0xff]
        %v460 = vld [vmem:[%s174 + $0x438] sm:$0xff]
        %v461 = vld [vmem:[%s174 + $0x440] sm:$0xff]
        %v462 = vld [vmem:[%s174 + $0x448] sm:$0xff]
        %v463 = vld [vmem:[%s174 + $0x450] sm:$0xff]
        %v464 = vld [vmem:[%s174 + $0x458] sm:$0xff]
        %v465 = vld [vmem:[%s174 + $0x460] sm:$0xff]
        %v466 = vld [vmem:[%s174 + $0x468] sm:$0xff]
        %v467 = vld [vmem:[%s174 + $0x470] sm:$0xff]
        %v468 = vld [vmem:[%s174 + $0x478] sm:$0xff]
        %v469 = vld [vmem:[%s174 + $0x480] sm:$0xff]
        %v470 = vld [vmem:[%s174 + $0x488] sm:$0xff]
        %v471 = vld [vmem:[%s174 + $0x490] sm:$0xff]
        %v472 = vld [vmem:[%s174 + $0x498] sm:$0xff]
        %v473 = vld [vmem:[%s174 + $0x4a0] sm:$0xff]
        %v474 = vld [vmem:[%s174 + $0x4a8] sm:$0xff]
        %v475 = vld [vmem:[%s174 + $0x4b0] sm:$0xff]
        %v476 = vld [vmem:[%s174 + $0x4b8] sm:$0xff]
        %v477 = vld [vmem:[%s174 + $0x4c0] sm:$0xff]
        %v478 = vld [vmem:[%s174 + $0x4c8] sm:$0xff]
        %v479 = vld [vmem:[%s174 + $0x4d0] sm:$0xff]
        %v480 = vld [vmem:[%s174 + $0x4d8] sm:$0xff]
        %v481 = vld [vmem:[%s174 + $0x4e0] sm:$0xff]
        %v482 = vld [vmem:[%s174 + $0x4e8] sm:$0xff]
        %v483 = vld [vmem:[%s174 + $0x4f0] sm:$0xff]
        %v484 = vld [vmem:[%s174 + $0x4f8] sm:$0xff]
        %v485 = vld [vmem:[%s174 + $0x500] sm:$0xff]
        %v486 = vld [vmem:[%s174 + $0x508] sm:$0xff]
        %v487 = vld [vmem:[%s174 + $0x510] sm:$0xff]
        %v488 = vld [vmem:[%s174 + $0x518] sm:$0xff]
        %v489 = vld [vmem:[%s174 + $0x520] sm:$0xff]
        %v490 = vld [vmem:[%s174 + $0x528] sm:$0xff]
        %v491 = vld [vmem:[%s174 + $0x530] sm:$0xff]
        %v492 = vld [vmem:[%s174 + $0x538] sm:$0xff]
        %v493 = vld [vmem:[%s174 + $0x540] sm:$0xff]
        %v494 = vld [vmem:[%s174 + $0x548] sm:$0xff]
        %v495 = vld [vmem:[%s174 + $0x550] sm:$0xff]
        %v496 = vld [vmem:[%s174 + $0x558] sm:$0xff]
        %v497 = vld [vmem:[%s174 + $0x560] sm:$0xff]
        %v498 = vld [vmem:[%s174 + $0x568] sm:$0xff]
        %v499 = vld [vmem:[%s174 + $0x570] sm:$0xff]
        %v500 = vld [vmem:[%s174 + $0x578] sm:$0xff]
        %v501 = vld [vmem:[%s174 + $0x580] sm:$0xff]
        %v502 = vld [vmem:[%s174 + $0x588] sm:$0xff]
        %v503 = vld [vmem:[%s174 + $0x590] sm:$0xff]
        %v504 = vld [vmem:[%s174 + $0x598] sm:$0xff]
        %v505 = vld [vmem:[%s174 + $0x5a0] sm:$0xff]
        %v506 = vld [vmem:[%s174 + $0x5a8] sm:$0xff]
        %v507 = vld [vmem:[%s174 + $0x5b0] sm:$0xff]
        %v508 = vld [vmem:[%s174 + $0x5b8] sm:$0xff]
        %v509 = vld [vmem:[%s174 + $0x5c0] sm:$0xff]
        %v510 = vld [vmem:[%s174 + $0x5c8] sm:$0xff]
        %v511 = vld [vmem:[%s174 + $0x5d0] sm:$0xff]
        %v512 = vld [vmem:[%s174 + $0x5d8] sm:$0xff]
        %v513 = vld [vmem:[%s174 + $0x5e0] sm:$0xff]
        %v514 = vld [vmem:[%s174 + $0x5e8] sm:$0xff]
        %v515 = vld [vmem:[%s174 + $0x5f0] sm:$0xff]
        %v516 = vld [vmem:[%s174 + $0x5f8] sm:$0xff]
        %v517 = vld [vmem:[%s174 + $0x600] sm:$0xff]
        %v518 = vld [vmem:[%s174 + $0x608] sm:$0xff]
        %v519 = vld [vmem:[%s174 + $0x610] sm:$0xff]
        %v520 = vld [vmem:[%s174 + $0x618] sm:$0xff]
        %v521 = vld [vmem:[%s174 + $0x620] sm:$0xff]
        %v522 = vld [vmem:[%s174 + $0x628] sm:$0xff]
        %v523 = vld [vmem:[%s174 + $0x630] sm:$0xff]
        %v524 = vld [vmem:[%s174 + $0x638] sm:$0xff]
        %v525 = vld [vmem:[%s174 + $0x640] sm:$0xff]
        %v526 = vld [vmem:[%s174 + $0x648] sm:$0xff]
        %v527 = vld [vmem:[%s174 + $0x650] sm:$0xff]
        %v528 = vld [vmem:[%s174 + $0x658] sm:$0xff]
        %v529 = vld [vmem:[%s174 + $0x660] sm:$0xff]
        %v530 = vld [vmem:[%s174 + $0x668] sm:$0xff]
        %v531 = vld [vmem:[%s174 + $0x670] sm:$0xff]
        %v532 = vld [vmem:[%s174 + $0x678] sm:$0xff]
        %v533 = vld [vmem:[%s174 + $0x680] sm:$0xff]
        %v534 = vld [vmem:[%s174 + $0x688] sm:$0xff]
        %v535 = vld [vmem:[%s174 + $0x690] sm:$0xff]
        %v536 = vld [vmem:[%s174 + $0x698] sm:$0xff]
        %v537 = vld [vmem:[%s174 + $0x6a0] sm:$0xff]
        %v538 = vld [vmem:[%s174 + $0x6a8] sm:$0xff]
        %v539 = vld [vmem:[%s174 + $0x6b0] sm:$0xff]
        %v540 = vld [vmem:[%s174 + $0x6b8] sm:$0xff]
        %v541 = vld [vmem:[%s174 + $0x6c0] sm:$0xff]
        %v542 = vld [vmem:[%s174 + $0x6c8] sm:$0xff]
        %v543 = vld [vmem:[%s174 + $0x6d0] sm:$0xff]
        %v544 = vld [vmem:[%s174 + $0x6d8] sm:$0xff]
        %v545 = vld [vmem:[%s174 + $0x6e0] sm:$0xff]
        %v546 = vld [vmem:[%s174 + $0x6e8] sm:$0xff]
        %v547 = vld [vmem:[%s174 + $0x6f0] sm:$0xff]
        %v548 = vld [vmem:[%s174 + $0x6f8] sm:$0xff]
        %v549 = vld [vmem:[%s174 + $0x700] sm:$0xff]
        %v550 = vld [vmem:[%s174 + $0x708] sm:$0xff]
        %v551 = vld [vmem:[%s174 + $0x710] sm:$0xff]
        %v552 = vld [vmem:[%s174 + $0x718] sm:$0xff]
        %v553 = vld [vmem:[%s174 + $0x720] sm:$0xff]
        %v554 = vld [vmem:[%s174 + $0x728] sm:$0xff]
        %v555 = vld [vmem:[%s174 + $0x730] sm:$0xff]
        %v556 = vld [vmem:[%s174 + $0x738] sm:$0xff]
        %v557 = vld [vmem:[%s174 + $0x740] sm:$0xff]
        %v558 = vld [vmem:[%s174 + $0x748] sm:$0xff]
        %v559 = vld [vmem:[%s174 + $0x750] sm:$0xff]
        %v560 = vld [vmem:[%s174 + $0x758] sm:$0xff]
        %v561 = vld [vmem:[%s174 + $0x760] sm:$0xff]
        %v562 = vld [vmem:[%s174 + $0x768] sm:$0xff]
        %v563 = vld [vmem:[%s174 + $0x770] sm:$0xff]
        %v564 = vld [vmem:[%s174 + $0x778] sm:$0xff]
        %v565 = vld [vmem:[%s174 + $0x780] sm:$0xff]
        %v566 = vld [vmem:[%s174 + $0x788] sm:$0xff]
        %v567 = vld [vmem:[%s174 + $0x790] sm:$0xff]
        %v568 = vld [vmem:[%s174 + $0x798] sm:$0xff]
        %v569 = vld [vmem:[%s174 + $0x7a0] sm:$0xff]
        %v570 = vld [vmem:[%s174 + $0x7a8] sm:$0xff]
        %v571 = vld [vmem:[%s174 + $0x7b0] sm:$0xff]
        %v572 = vld [vmem:[%s174 + $0x7b8] sm:$0xff]
        %v573 = vld [vmem:[%s174 + $0x7c0] sm:$0xff]
        %v574 = vld [vmem:[%s174 + $0x7c8] sm:$0xff]
        %v575 = vld [vmem:[%s174 + $0x7d0] sm:$0xff]
        %v576 = vld [vmem:[%s174 + $0x7d8] sm:$0xff]
        %v577 = vld [vmem:[%s174 + $0x7e0] sm:$0xff]
        %v578 = vld [vmem:[%s174 + $0x7e8] sm:$0xff]
        %v579 = vld [vmem:[%s174 + $0x7f0] sm:$0xff]
        %v580 = vld [vmem:[%s174 + $0x7f8] sm:$0xff]
        %581 = vmatprep.subr.mxu0 %v326
        %582 = vmatpush1.msra.mxu0 %v325
        %583 = vmatprep.subr.mxu0 %v328
        %584 = vmatpush1.msra.mxu0 %v327
        %585 = vmatprep.subr.mxu0 %v330
        %586 = vmatpush1.msra.mxu0 %v329
        %587 = vmatprep.subr.mxu0 %v332
        %588 = vmatpush1.msra.mxu0 %v331
        %589 = vmatprep.subr.mxu0 %v334
        %590 = vmatpush1.msra.mxu0 %v333
        %591 = vmatprep.subr.mxu0 %v336
        %592 = vmatpush1.msra.mxu0 %v335
        %593 = vmatprep.subr.mxu0 %v338
        %594 = vmatpush1.msra.mxu0 %v337
        %595 = vmatprep.subr.mxu0 %v340
        %596 = vmatpush1.msra.mxu0 %v339
        %597 = vmatprep.subr.mxu0 %v342
        %598 = vmatpush1.msra.mxu0 %v341
        %599 = vmatprep.subr.mxu0 %v344
        %600 = vmatpush1.msra.mxu0 %v343
        %601 = vmatprep.subr.mxu0 %v346
        %602 = vmatpush1.msra.mxu0 %v345
        %603 = vmatprep.subr.mxu0 %v348
        %604 = vmatpush1.msra.mxu0 %v347
        %605 = vmatprep.subr.mxu0 %v350
        %606 = vmatpush1.msra.mxu0 %v349
        %607 = vmatprep.subr.mxu0 %v352
        %608 = vmatpush1.msra.mxu0 %v351
        %609 = vmatprep.subr.mxu0 %v354
        %610 = vmatpush1.msra.mxu0 %v353
        %611 = vmatprep.subr.mxu0 %v356
        %612 = vmatpush1.msra.mxu0 %v355
        %613 = vmatprep.subr.mxu0 %v358
        %614 = vmatpush1.msra.mxu0 %v357
        %615 = vmatprep.subr.mxu0 %v360
        %616 = vmatpush1.msra.mxu0 %v359
        %617 = vmatprep.subr.mxu0 %v362
        %618 = vmatpush1.msra.mxu0 %v361
        %619 = vmatprep.subr.mxu0 %v364
        %620 = vmatpush1.msra.mxu0 %v363
        %621 = vmatprep.subr.mxu0 %v366
        %622 = vmatpush1.msra.mxu0 %v365
        %623 = vmatprep.subr.mxu0 %v368
        %624 = vmatpush1.msra.mxu0 %v367
        %625 = vmatprep.subr.mxu0 %v370
        %626 = vmatpush1.msra.mxu0 %v369
        %627 = vmatprep.subr.mxu0 %v372
        %628 = vmatpush1.msra.mxu0 %v371
        %629 = vmatprep.subr.mxu0 %v374
        %630 = vmatpush1.msra.mxu0 %v373
        %631 = vmatprep.subr.mxu0 %v376
        %632 = vmatpush1.msra.mxu0 %v375
        %633 = vmatprep.subr.mxu0 %v378
        %634 = vmatpush1.msra.mxu0 %v377
        %635 = vmatprep.subr.mxu0 %v380
        %636 = vmatpush1.msra.mxu0 %v379
        %637 = vmatprep.subr.mxu0 %v382
        %638 = vmatpush1.msra.mxu0 %v381
        %639 = vmatprep.subr.mxu0 %v384
        %640 = vmatpush1.msra.mxu0 %v383
        %641 = vmatprep.subr.mxu0 %v386
        %642 = vmatpush1.msra.mxu0 %v385
        %643 = vmatprep.subr.mxu0 %v388
        %644 = vmatpush1.msra.mxu0 %v387
        %645 = vmatprep.mubr.f32.mxu0 %v198
        %646 = vmatmul.mubr.f32.gmra.mrb[0].mxu0 %v197
        %v647 = vpop.f32.mrb[0].mxu0
        %v648 = vadd.f32 0.0, %v647
        %v649 = vpop.f32.mrb[0].mxu0
        %v650 = vadd.f32 0.0, %v649
        %651 = vmatprep.mubr.f32.mxu0 %v206
        %652 = vmatmul.mubr.f32.gmra.mrb[0].mxu0 %v205
        %v653 = vpop.f32.mrb[0].mxu0
        %v654 = vadd.f32 0.0, %v653
        %v655 = vpop.f32.mrb[0].mxu0
        %v656 = vadd.f32 0.0, %v655
        %657 = vmatprep.mubr.f32.mxu0 %v214
        %658 = vmatmul.mubr.f32.gmra.mrb[0].mxu0 %v213
        %v659 = vpop.f32.mrb[0].mxu0
        %v660 = vadd.f32 0.0, %v659
        %v661 = vpop.f32.mrb[0].mxu0
        %v662 = vadd.f32 0.0, %v661
        %663 = vmatprep.mubr.f32.mxu0 %v222
        %664 = vmatmul.mubr.f32.gmra.mrb[0].mxu0 %v221
        %v665 = vpop.f32.mrb[0].mxu0
        %v666 = vadd.f32 0.0, %v665
        %v667 = vpop.f32.mrb[0].mxu0
        %v668 = vadd.f32 0.0, %v667
        %669 = vmatprep.mubr.f32.mxu0 %v230
        %670 = vmatmul.mubr.f32.gmra.mrb[0].mxu0 %v229
        %v671 = vpop.f32.mrb[0].mxu0
        %v672 = vadd.f32 0.0, %v671
        %v673 = vpop.f32.mrb[0].mxu0
        %v674 = vadd.f32 0.0, %v673
        %675 = vmatprep.mubr.f32.mxu0 %v238
        %676 = vmatmul.mubr.f32.gmra.mrb[0].mxu0 %v237
        %v677 = vpop.f32.mrb[0].mxu0
        %v678 = vadd.f32 0.0, %v677
        %v679 = vpop.f32.mrb[0].mxu0
        %v680 = vadd.f32 0.0, %v679
        %681 = vmatprep.mubr.f32.mxu0 %v246
        %682 = vmatmul.mubr.f32.gmra.mrb[0].mxu0 %v245
        %v683 = vpop.f32.mrb[0].mxu0
        %v684 = vadd.f32 0.0, %v683
        %v685 = vpop.f32.mrb[0].mxu0
        %v686 = vadd.f32 0.0, %v685
        %687 = vmatprep.mubr.f32.mxu0 %v254
        %688 = vmatmul.mubr.f32.gmra.mrb[0].mxu0 %v253
        %v689 = vpop.f32.mrb[0].mxu0
        %v690 = vadd.f32 0.0, %v689
        %v691 = vpop.f32.mrb[0].mxu0
        %v692 = vadd.f32 0.0, %v691
        %693 = vmatprep.mubr.f32.mxu0 %v262
        %694 = vmatmul.mubr.f32.gmra.mrb[0].mxu0 %v261
        %v695 = vpop.f32.mrb[0].mxu0
        %v696 = vadd.f32 0.0, %v695
        %v697 = vpop.f32.mrb[0].mxu0
        %v698 = vadd.f32 0.0, %v697
        %699 = vmatprep.mubr.f32.mxu0 %v270
        %700 = vmatmul.mubr.f32.gmra.mrb[0].mxu0 %v269
        %v701 = vpop.f32.mrb[0].mxu0
        %v702 = vadd.f32 0.0, %v701
        %v703 = vpop.f32.mrb[0].mxu0
        %v704 = vadd.f32 0.0, %v703
        %705 = vmatprep.mubr.f32.mxu0 %v278
        %706 = vmatmul.mubr.f32.gmra.mrb[0].mxu0 %v277
        %v707 = vpop.f32.mrb[0].mxu0
        %v708 = vadd.f32 0.0, %v707
        %v709 = vpop.f32.mrb[0].mxu0
        %v710 = vadd.f32 0.0, %v709
        %711 = vmatprep.mubr.f32.mxu0 %v286
        %712 = vmatmul.mubr.f32.gmra.mrb[0].mxu0 %v285
        %v713 = vpop.f32.mrb[0].mxu0
        %v714 = vadd.f32 0.0, %v713
        %v715 = vpop.f32.mrb[0].mxu0
        %v716 = vadd.f32 0.0, %v715
        %717 = vmatprep.mubr.f32.mxu0 %v294
        %718 = vmatmul.mubr.f32.gmra.mrb[0].mxu0 %v293
        %v719 = vpop.f32.mrb[0].mxu0
        %v720 = vadd.f32 0.0, %v719
        %v721 = vpop.f32.mrb[0].mxu0
        %v722 = vadd.f32 0.0, %v721
        %723 = vmatprep.mubr.f32.mxu0 %v302
        %724 = vmatmul.mubr.f32.gmra.mrb[0].mxu0 %v301
        %v725 = vpop.f32.mrb[0].mxu0
        %v726 = vadd.f32 0.0, %v725
        %v727 = vpop.f32.mrb[0].mxu0
        %v728 = vadd.f32 0.0, %v727
        %729 = vmatprep.mubr.f32.mxu0 %v310
        %730 = vmatmul.mubr.f32.gmra.mrb[0].mxu0 %v309
        %v731 = vpop.f32.mrb[0].mxu0
        %v732 = vadd.f32 0.0, %v731
        %v733 = vpop.f32.mrb[0].mxu0
        %v734 = vadd.f32 0.0, %v733
        %735 = vmatprep.mubr.f32.mxu0 %v318
        %736 = vmatmul.mubr.f32.gmra.mrb[0].mxu0 %v317
        %v737 = vpop.f32.mrb[0].mxu0
        %v738 = vadd.f32 0.0, %v737
        %v739 = vpop.f32.mrb[0].mxu0
        %v740 = vadd.f32 0.0, %v739
        %741 = vdwg.mxu0
        %742 = vmatprep.subr.mxu0 %v390
        %743 = vmatpush1.msra.mxu0 %v389
        %744 = vmatprep.subr.mxu0 %v392
        %745 = vmatpush1.msra.mxu0 %v391
        %746 = vmatprep.subr.mxu0 %v394
        %747 = vmatpush1.msra.mxu0 %v393
        %748 = vmatprep.subr.mxu0 %v396
        %749 = vmatpush1.msra.mxu0 %v395
        %750 = vmatprep.subr.mxu0 %v398
        %751 = vmatpush1.msra.mxu0 %v397
        %752 = vmatprep.subr.mxu0 %v400
        %753 = vmatpush1.msra.mxu0 %v399
        %754 = vmatprep.subr.mxu0 %v402
        %755 = vmatpush1.msra.mxu0 %v401
        %756 = vmatprep.subr.mxu0 %v404
        %757 = vmatpush1.msra.mxu0 %v403
        %758 = vmatprep.subr.mxu0 %v406
        %759 = vmatpush1.msra.mxu0 %v405
        %760 = vmatprep.subr.mxu0 %v408
        %761 = vmatpush1.msra.mxu0 %v407
        %762 = vmatprep.subr.mxu0 %v410
        %763 = vmatpush1.msra.mxu0 %v409
        %764 = vmatprep.subr.mxu0 %v412
        %765 = vmatpush1.msra.mxu0 %v411
        %766 = vmatprep.subr.mxu0 %v414
        %767 = vmatpush1.msra.mxu0 %v413
        %768 = vmatprep.subr.mxu0 %v416
        %769 = vmatpush1.msra.mxu0 %v415
        %770 = vmatprep.subr.mxu0 %v418
        %771 = vmatpush1.msra.mxu0 %v417
        %772 = vmatprep.subr.mxu0 %v420
        %773 = vmatpush1.msra.mxu0 %v419
        %774 = vmatprep.subr.mxu0 %v422
        %775 = vmatpush1.msra.mxu0 %v421
        %776 = vmatprep.subr.mxu0 %v424
        %777 = vmatpush1.msra.mxu0 %v423
        %778 = vmatprep.subr.mxu0 %v426
        %779 = vmatpush1.msra.mxu0 %v425
        %780 = vmatprep.subr.mxu0 %v428
        %781 = vmatpush1.msra.mxu0 %v427
        %782 = vmatprep.subr.mxu0 %v430
        %783 = vmatpush1.msra.mxu0 %v429
        %784 = vmatprep.subr.mxu0 %v432
        %785 = vmatpush1.msra.mxu0 %v431
        %786 = vmatprep.subr.mxu0 %v434
        %787 = vmatpush1.msra.mxu0 %v433
        %788 = vmatprep.subr.mxu0 %v436
        %789 = vmatpush1.msra.mxu0 %v435
        %790 = vmatprep.subr.mxu0 %v438
        %791 = vmatpush1.msra.mxu0 %v437
        %792 = vmatprep.subr.mxu0 %v440
        %793 = vmatpush1.msra.mxu0 %v439
        %794 = vmatprep.subr.mxu0 %v442
        %795 = vmatpush1.msra.mxu0 %v441
        %796 = vmatprep.subr.mxu0 %v444
        %797 = vmatpush1.msra.mxu0 %v443
        %798 = vmatprep.subr.mxu0 %v446
        %799 = vmatpush1.msra.mxu0 %v445
        %800 = vmatprep.subr.mxu0 %v448
        %801 = vmatpush1.msra.mxu0 %v447
        %802 = vmatprep.subr.mxu0 %v450
        %803 = vmatpush1.msra.mxu0 %v449
        %804 = vmatprep.subr.mxu0 %v452
        %805 = vmatpush1.msra.mxu0 %v451
        %806 = vmatprep.mubr.f32.mxu0 %v200
        %807 = vmatmul.mubr.f32.gmra.mrb[0].mxu0 %v199
        %v808 = vpop.f32.mrb[0].mxu0
        %v809 = vadd.f32 %v648, %v808
        %v810 = vpop.f32.mrb[0].mxu0
        %v811 = vadd.f32 %v650, %v810
        %812 = vmatprep.mubr.f32.mxu0 %v208
        %813 = vmatmul.mubr.f32.gmra.mrb[0].mxu0 %v207
        %v814 = vpop.f32.mrb[0].mxu0
        %v815 = vadd.f32 %v654, %v814
        %v816 = vpop.f32.mrb[0].mxu0
        %v817 = vadd.f32 %v656, %v816
        %818 = vmatprep.mubr.f32.mxu0 %v216
        %819 = vmatmul.mubr.f32.gmra.mrb[0].mxu0 %v215
        %v820 = vpop.f32.mrb[0].mxu0
        %v821 = vadd.f32 %v660, %v820
        %v822 = vpop.f32.mrb[0].mxu0
        %v823 = vadd.f32 %v662, %v822
        %824 = vmatprep.mubr.f32.mxu0 %v224
        %825 = vmatmul.mubr.f32.gmra.mrb[0].mxu0 %v223
        %v826 = vpop.f32.mrb[0].mxu0
        %v827 = vadd.f32 %v666, %v826
        %v828 = vpop.f32.mrb[0].mxu0
        %v829 = vadd.f32 %v668, %v828
        %830 = vmatprep.mubr.f32.mxu0 %v232
        %831 = vmatmul.mubr.f32.gmra.mrb[0].mxu0 %v231
        %v832 = vpop.f32.mrb[0].mxu0
        %v833 = vadd.f32 %v672, %v832
        %v834 = vpop.f32.mrb[0].mxu0
        %v835 = vadd.f32 %v674, %v834
        %836 = vmatprep.mubr.f32.mxu0 %v240
        %837 = vmatmul.mubr.f32.gmra.mrb[0].mxu0 %v239
        %v838 = vpop.f32.mrb[0].mxu0
        %v839 = vadd.f32 %v678, %v838
        %v840 = vpop.f32.mrb[0].mxu0
        %v841 = vadd.f32 %v680, %v840
        %842 = vmatprep.mubr.f32.mxu0 %v248
        %843 = vmatmul.mubr.f32.gmra.mrb[0].mxu0 %v247
        %v844 = vpop.f32.mrb[0].mxu0
        %v845 = vadd.f32 %v684, %v844
        %v846 = vpop.f32.mrb[0].mxu0
        %v847 = vadd.f32 %v686, %v846
        %848 = vmatprep.mubr.f32.mxu0 %v256
        %849 = vmatmul.mubr.f32.gmra.mrb[0].mxu0 %v255
        %v850 = vpop.f32.mrb[0].mxu0
        %v851 = vadd.f32 %v690, %v850
        %v852 = vpop.f32.mrb[0].mxu0
        %v853 = vadd.f32 %v692, %v852
        %854 = vmatprep.mubr.f32.mxu0 %v264
        %855 = vmatmul.mubr.f32.gmra.mrb[0].mxu0 %v263
        %v856 = vpop.f32.mrb[0].mxu0
        %v857 = vadd.f32 %v696, %v856
        %v858 = vpop.f32.mrb[0].mxu0
        %v859 = vadd.f32 %v698, %v858
        %860 = vmatprep.mubr.f32.mxu0 %v272
        %861 = vmatmul.mubr.f32.gmra.mrb[0].mxu0 %v271
        %v862 = vpop.f32.mrb[0].mxu0
        %v863 = vadd.f32 %v702, %v862
        %v864 = vpop.f32.mrb[0].mxu0
        %v865 = vadd.f32 %v704, %v864
        %866 = vmatprep.mubr.f32.mxu0 %v280
        %867 = vmatmul.mubr.f32.gmra.mrb[0].mxu0 %v279
        %v868 = vpop.f32.mrb[0].mxu0
        %v869 = vadd.f32 %v708, %v868
        %v870 = vpop.f32.mrb[0].mxu0
        %v871 = vadd.f32 %v710, %v870
        %872 = vmatprep.mubr.f32.mxu0 %v288
        %873 = vmatmul.mubr.f32.gmra.mrb[0].mxu0 %v287
        %v874 = vpop.f32.mrb[0].mxu0
        %v875 = vadd.f32 %v714, %v874
        %v876 = vpop.f32.mrb[0].mxu0
        %v877 = vadd.f32 %v716, %v876
        %878 = vmatprep.mubr.f32.mxu0 %v296
        %879 = vmatmul.mubr.f32.gmra.mrb[0].mxu0 %v295
        %v880 = vpop.f32.mrb[0].mxu0
        %v881 = vadd.f32 %v720, %v880
        %v882 = vpop.f32.mrb[0].mxu0
        %v883 = vadd.f32 %v722, %v882
        %884 = vmatprep.mubr.f32.mxu0 %v304
        %885 = vmatmul.mubr.f32.gmra.mrb[0].mxu0 %v303
        %v886 = vpop.f32.mrb[0].mxu0
        %v887 = vadd.f32 %v726, %v886
        %v888 = vpop.f32.mrb[0].mxu0
        %v889 = vadd.f32 %v728, %v888
        %890 = vmatprep.mubr.f32.mxu0 %v312
        %891 = vmatmul.mubr.f32.gmra.mrb[0].mxu0 %v311
        %v892 = vpop.f32.mrb[0].mxu0
        %v893 = vadd.f32 %v732, %v892
        %v894 = vpop.f32.mrb[0].mxu0
        %v895 = vadd.f32 %v734, %v894
        %896 = vmatprep.mubr.f32.mxu0 %v320
        %897 = vmatmul.mubr.f32.gmra.mrb[0].mxu0 %v319
        %v898 = vpop.f32.mrb[0].mxu0
        %v899 = vadd.f32 %v738, %v898
        %v900 = vpop.f32.mrb[0].mxu0
        %v901 = vadd.f32 %v740, %v900
        %902 = vdwg.mxu0
        %903 = vmatprep.subr.mxu0 %v454
        %904 = vmatpush1.msra.mxu0 %v453
        %905 = vmatprep.subr.mxu0 %v456
        %906 = vmatpush1.msra.mxu0 %v455
        %907 = vmatprep.subr.mxu0 %v458
        %908 = vmatpush1.msra.mxu0 %v457
        %909 = vmatprep.subr.mxu0 %v460
        %910 = vmatpush1.msra.mxu0 %v459
        %911 = vmatprep.subr.mxu0 %v462
        %912 = vmatpush1.msra.mxu0 %v461
        %913 = vmatprep.subr.mxu0 %v464
        %914 = vmatpush1.msra.mxu0 %v463
        %915 = vmatprep.subr.mxu0 %v466
        %916 = vmatpush1.msra.mxu0 %v465
        %917 = vmatprep.subr.mxu0 %v468
        %918 = vmatpush1.msra.mxu0 %v467
        %919 = vmatprep.subr.mxu0 %v470
        %920 = vmatpush1.msra.mxu0 %v469
        %921 = vmatprep.subr.mxu0 %v472
        %922 = vmatpush1.msra.mxu0 %v471
        %923 = vmatprep.subr.mxu0 %v474
        %924 = vmatpush1.msra.mxu0 %v473
        %925 = vmatprep.subr.mxu0 %v476
        %926 = vmatpush1.msra.mxu0 %v475
        %927 = vmatprep.subr.mxu0 %v478
        %928 = vmatpush1.msra.mxu0 %v477
        %929 = vmatprep.subr.mxu0 %v480
        %930 = vmatpush1.msra.mxu0 %v479
        %931 = vmatprep.subr.mxu0 %v482
        %932 = vmatpush1.msra.mxu0 %v481
        %933 = vmatprep.subr.mxu0 %v484
        %934 = vmatpush1.msra.mxu0 %v483
        %935 = vmatprep.subr.mxu0 %v486
        %936 = vmatpush1.msra.mxu0 %v485
        %937 = vmatprep.subr.mxu0 %v488
        %938 = vmatpush1.msra.mxu0 %v487
        %939 = vmatprep.subr.mxu0 %v490
        %940 = vmatpush1.msra.mxu0 %v489
        %941 = vmatprep.subr.mxu0 %v492
        %942 = vmatpush1.msra.mxu0 %v491
        %943 = vmatprep.subr.mxu0 %v494
        %944 = vmatpush1.msra.mxu0 %v493
        %945 = vmatprep.subr.mxu0 %v496
        %946 = vmatpush1.msra.mxu0 %v495
        %947 = vmatprep.subr.mxu0 %v498
        %948 = vmatpush1.msra.mxu0 %v497
        %949 = vmatprep.subr.mxu0 %v500
        %950 = vmatpush1.msra.mxu0 %v499
        %951 = vmatprep.subr.mxu0 %v502
        %952 = vmatpush1.msra.mxu0 %v501
        %953 = vmatprep.subr.mxu0 %v504
        %954 = vmatpush1.msra.mxu0 %v503
        %955 = vmatprep.subr.mxu0 %v506
        %956 = vmatpush1.msra.mxu0 %v505
        %957 = vmatprep.subr.mxu0 %v508
        %958 = vmatpush1.msra.mxu0 %v507
        %959 = vmatprep.subr.mxu0 %v510
        %960 = vmatpush1.msra.mxu0 %v509
        %961 = vmatprep.subr.mxu0 %v512
        %962 = vmatpush1.msra.mxu0 %v511
        %963 = vmatprep.subr.mxu0 %v514
        %964 = vmatpush1.msra.mxu0 %v513
        %965 = vmatprep.subr.mxu0 %v516
        %966 = vmatpush1.msra.mxu0 %v515
        %967 = vmatprep.mubr.f32.mxu0 %v202
        %968 = vmatmul.mubr.f32.gmra.mrb[0].mxu0 %v201
        %v969 = vpop.f32.mrb[0].mxu0
        %v970 = vadd.f32 %v809, %v969
        %v971 = vpop.f32.mrb[0].mxu0
        %v972 = vadd.f32 %v811, %v971
        %973 = vmatprep.mubr.f32.mxu0 %v210
        %974 = vmatmul.mubr.f32.gmra.mrb[0].mxu0 %v209
        %v975 = vpop.f32.mrb[0].mxu0
        %v976 = vadd.f32 %v815, %v975
        %v977 = vpop.f32.mrb[0].mxu0
        %v978 = vadd.f32 %v817, %v977
        %979 = vmatprep.mubr.f32.mxu0 %v218
        %980 = vmatmul.mubr.f32.gmra.mrb[0].mxu0 %v217
        %v981 = vpop.f32.mrb[0].mxu0
        %v982 = vadd.f32 %v821, %v981
        %v983 = vpop.f32.mrb[0].mxu0
        %v984 = vadd.f32 %v823, %v983
        %985 = vmatprep.mubr.f32.mxu0 %v226
        %986 = vmatmul.mubr.f32.gmra.mrb[0].mxu0 %v225
        %v987 = vpop.f32.mrb[0].mxu0
        %v988 = vadd.f32 %v827, %v987
        %v989 = vpop.f32.mrb[0].mxu0
        %v990 = vadd.f32 %v829, %v989
        %991 = vmatprep.mubr.f32.mxu0 %v234
        %992 = vmatmul.mubr.f32.gmra.mrb[0].mxu0 %v233
        %v993 = vpop.f32.mrb[0].mxu0
        %v994 = vadd.f32 %v833, %v993
        %v995 = vpop.f32.mrb[0].mxu0
        %v996 = vadd.f32 %v835, %v995
        %997 = vmatprep.mubr.f32.mxu0 %v242
        %998 = vmatmul.mubr.f32.gmra.mrb[0].mxu0 %v241
        %v999 = vpop.f32.mrb[0].mxu0
        %v1000 = vadd.f32 %v839, %v999
        %v1001 = vpop.f32.mrb[0].mxu0
        %v1002 = vadd.f32 %v841, %v1001
        %1003 = vmatprep.mubr.f32.mxu0 %v250
        %1004 = vmatmul.mubr.f32.gmra.mrb[0].mxu0 %v249
        %v1005 = vpop.f32.mrb[0].mxu0
        %v1006 = vadd.f32 %v845, %v1005
        %v1007 = vpop.f32.mrb[0].mxu0
        %v1008 = vadd.f32 %v847, %v1007
        %1009 = vmatprep.mubr.f32.mxu0 %v258
        %1010 = vmatmul.mubr.f32.gmra.mrb[0].mxu0 %v257
        %v1011 = vpop.f32.mrb[0].mxu0
        %v1012 = vadd.f32 %v851, %v1011
        %v1013 = vpop.f32.mrb[0].mxu0
        %v1014 = vadd.f32 %v853, %v1013
        %1015 = vmatprep.mubr.f32.mxu0 %v266
        %1016 = vmatmul.mubr.f32.gmra.mrb[0].mxu0 %v265
        %v1017 = vpop.f32.mrb[0].mxu0
        %v1018 = vadd.f32 %v857, %v1017
        %v1019 = vpop.f32.mrb[0].mxu0
        %v1020 = vadd.f32 %v859, %v1019
        %1021 = vmatprep.mubr.f32.mxu0 %v274
        %1022 = vmatmul.mubr.f32.gmra.mrb[0].mxu0 %v273
        %v1023 = vpop.f32.mrb[0].mxu0
        %v1024 = vadd.f32 %v863, %v1023
        %v1025 = vpop.f32.mrb[0].mxu0
        %v1026 = vadd.f32 %v865, %v1025
        %1027 = vmatprep.mubr.f32.mxu0 %v282
        %1028 = vmatmul.mubr.f32.gmra.mrb[0].mxu0 %v281
        %v1029 = vpop.f32.mrb[0].mxu0
        %v1030 = vadd.f32 %v869, %v1029
        %v1031 = vpop.f32.mrb[0].mxu0
        %v1032 = vadd.f32 %v871, %v1031
        %1033 = vmatprep.mubr.f32.mxu0 %v290
        %1034 = vmatmul.mubr.f32.gmra.mrb[0].mxu0 %v289
        %v1035 = vpop.f32.mrb[0].mxu0
        %v1036 = vadd.f32 %v875, %v1035
        %v1037 = vpop.f32.mrb[0].mxu0
        %v1038 = vadd.f32 %v877, %v1037
        %1039 = vmatprep.mubr.f32.mxu0 %v298
        %1040 = vmatmul.mubr.f32.gmra.mrb[0].mxu0 %v297
        %v1041 = vpop.f32.mrb[0].mxu0
        %v1042 = vadd.f32 %v881, %v1041
        %v1043 = vpop.f32.mrb[0].mxu0
        %v1044 = vadd.f32 %v883, %v1043
        %1045 = vmatprep.mubr.f32.mxu0 %v306
        %1046 = vmatmul.mubr.f32.gmra.mrb[0].mxu0 %v305
        %v1047 = vpop.f32.mrb[0].mxu0
        %v1048 = vadd.f32 %v887, %v1047
        %v1049 = vpop.f32.mrb[0].mxu0
        %v1050 = vadd.f32 %v889, %v1049
        %1051 = vmatprep.mubr.f32.mxu0 %v314
        %1052 = vmatmul.mubr.f32.gmra.mrb[0].mxu0 %v313
        %v1053 = vpop.f32.mrb[0].mxu0
        %v1054 = vadd.f32 %v893, %v1053
        %v1055 = vpop.f32.mrb[0].mxu0
        %v1056 = vadd.f32 %v895, %v1055
        %1057 = vmatprep.mubr.f32.mxu0 %v322
        %1058 = vmatmul.mubr.f32.gmra.mrb[0].mxu0 %v321
        %v1059 = vpop.f32.mrb[0].mxu0
        %v1060 = vadd.f32 %v899, %v1059
        %v1061 = vpop.f32.mrb[0].mxu0
        %v1062 = vadd.f32 %v901, %v1061
        %1063 = vdwg.mxu0
        %1064 = vmatprep.subr.mxu0 %v518
        %1065 = vmatpush1.msra.mxu0 %v517
        %1066 = vmatprep.subr.mxu0 %v520
        %1067 = vmatpush1.msra.mxu0 %v519
        %1068 = vmatprep.subr.mxu0 %v522
        %1069 = vmatpush1.msra.mxu0 %v521
        %1070 = vmatprep.subr.mxu0 %v524
        %1071 = vmatpush1.msra.mxu0 %v523
        %1072 = vmatprep.subr.mxu0 %v526
        %1073 = vmatpush1.msra.mxu0 %v525
        %1074 = vmatprep.subr.mxu0 %v528
        %1075 = vmatpush1.msra.mxu0 %v527
        %1076 = vmatprep.subr.mxu0 %v530
        %1077 = vmatpush1.msra.mxu0 %v529
        %1078 = vmatprep.subr.mxu0 %v532
        %1079 = vmatpush1.msra.mxu0 %v531
        %1080 = vmatprep.subr.mxu0 %v534
        %1081 = vmatpush1.msra.mxu0 %v533
        %1082 = vmatprep.subr.mxu0 %v536
        %1083 = vmatpush1.msra.mxu0 %v535
        %1084 = vmatprep.subr.mxu0 %v538
        %1085 = vmatpush1.msra.mxu0 %v537
        %1086 = vmatprep.subr.mxu0 %v540
        %1087 = vmatpush1.msra.mxu0 %v539
        %1088 = vmatprep.subr.mxu0 %v542
        %1089 = vmatpush1.msra.mxu0 %v541
        %1090 = vmatprep.subr.mxu0 %v544
        %1091 = vmatpush1.msra.mxu0 %v543
        %1092 = vmatprep.subr.mxu0 %v546
        %1093 = vmatpush1.msra.mxu0 %v545
        %1094 = vmatprep.subr.mxu0 %v548
        %1095 = vmatpush1.msra.mxu0 %v547
        %1096 = vmatprep.subr.mxu0 %v550
        %1097 = vmatpush1.msra.mxu0 %v549
        %1098 = vmatprep.subr.mxu0 %v552
        %1099 = vmatpush1.msra.mxu0 %v551
        %1100 = vmatprep.subr.mxu0 %v554
        %1101 = vmatpush1.msra.mxu0 %v553
        %1102 = vmatprep.subr.mxu0 %v556
        %1103 = vmatpush1.msra.mxu0 %v555
        %1104 = vmatprep.subr.mxu0 %v558
        %1105 = vmatpush1.msra.mxu0 %v557
        %1106 = vmatprep.subr.mxu0 %v560
        %1107 = vmatpush1.msra.mxu0 %v559
        %1108 = vmatprep.subr.mxu0 %v562
        %1109 = vmatpush1.msra.mxu0 %v561
        %1110 = vmatprep.subr.mxu0 %v564
        %1111 = vmatpush1.msra.mxu0 %v563
        %1112 = vmatprep.subr.mxu0 %v566
        %1113 = vmatpush1.msra.mxu0 %v565
        %1114 = vmatprep.subr.mxu0 %v568
        %1115 = vmatpush1.msra.mxu0 %v567
        %1116 = vmatprep.subr.mxu0 %v570
        %1117 = vmatpush1.msra.mxu0 %v569
        %1118 = vmatprep.subr.mxu0 %v572
        %1119 = vmatpush1.msra.mxu0 %v571
        %1120 = vmatprep.subr.mxu0 %v574
        %1121 = vmatpush1.msra.mxu0 %v573
        %1122 = vmatprep.subr.mxu0 %v576
        %1123 = vmatpush1.msra.mxu0 %v575
        %1124 = vmatprep.subr.mxu0 %v578
        %1125 = vmatpush1.msra.mxu0 %v577
        %1126 = vmatprep.subr.mxu0 %v580
        %1127 = vmatpush1.msra.mxu0 %v579
        %1128 = vmatprep.mubr.f32.mxu0 %v204
        %1129 = vmatmul.mubr.f32.gmra.mrb[0].mxu0 %v203
        %v1130 = vpop.f32.mrb[0].mxu0
        %v1131 = vadd.f32 %v970, %v1130
        %v1132 = vpop.f32.mrb[0].mxu0
        %v1133 = vadd.f32 %v972, %v1132
        %1134 = vmatprep.mubr.f32.mxu0 %v212
        %1135 = vmatmul.mubr.f32.gmra.mrb[0].mxu0 %v211
        %v1136 = vpop.f32.mrb[0].mxu0
        %v1137 = vadd.f32 %v976, %v1136
        %v1138 = vpop.f32.mrb[0].mxu0
        %v1139 = vadd.f32 %v978, %v1138
        %1140 = vmatprep.mubr.f32.mxu0 %v220
        %1141 = vmatmul.mubr.f32.gmra.mrb[0].mxu0 %v219
        %v1142 = vpop.f32.mrb[0].mxu0
        %v1143 = vadd.f32 %v982, %v1142
        %v1144 = vpop.f32.mrb[0].mxu0
        %v1145 = vadd.f32 %v984, %v1144
        %1146 = vmatprep.mubr.f32.mxu0 %v228
        %1147 = vmatmul.mubr.f32.gmra.mrb[0].mxu0 %v227
        %v1148 = vpop.f32.mrb[0].mxu0
        %v1149 = vadd.f32 %v988, %v1148
        %v1150 = vpop.f32.mrb[0].mxu0
        %v1151 = vadd.f32 %v990, %v1150
        %1152 = vmatprep.mubr.f32.mxu0 %v236
        %1153 = vmatmul.mubr.f32.gmra.mrb[0].mxu0 %v235
        %v1154 = vpop.f32.mrb[0].mxu0
        %v1155 = vadd.f32 %v994, %v1154
        %v1156 = vpop.f32.mrb[0].mxu0
        %v1157 = vadd.f32 %v996, %v1156
        %1158 = vmatprep.mubr.f32.mxu0 %v244
        %1159 = vmatmul.mubr.f32.gmra.mrb[0].mxu0 %v243
        %v1160 = vpop.f32.mrb[0].mxu0
        %v1161 = vadd.f32 %v1000, %v1160
        %v1162 = vpop.f32.mrb[0].mxu0
        %v1163 = vadd.f32 %v1002, %v1162
        %1164 = vmatprep.mubr.f32.mxu0 %v252
        %1165 = vmatmul.mubr.f32.gmra.mrb[0].mxu0 %v251
        %v1166 = vpop.f32.mrb[0].mxu0
        %v1167 = vadd.f32 %v1006, %v1166
        %v1168 = vpop.f32.mrb[0].mxu0
        %v1169 = vadd.f32 %v1008, %v1168
        %1170 = vmatprep.mubr.f32.mxu0 %v260
        %1171 = vmatmul.mubr.f32.gmra.mrb[0].mxu0 %v259
        %v1172 = vpop.f32.mrb[0].mxu0
        %v1173 = vadd.f32 %v1012, %v1172
        %v1174 = vpop.f32.mrb[0].mxu0
        %v1175 = vadd.f32 %v1014, %v1174
        %1176 = vmatprep.mubr.f32.mxu0 %v268
        %1177 = vmatmul.mubr.f32.gmra.mrb[0].mxu0 %v267
        %v1178 = vpop.f32.mrb[0].mxu0
        %v1179 = vadd.f32 %v1018, %v1178
        %v1180 = vpop.f32.mrb[0].mxu0
        %v1181 = vadd.f32 %v1020, %v1180
        %1182 = vmatprep.mubr.f32.mxu0 %v276
        %1183 = vmatmul.mubr.f32.gmra.mrb[0].mxu0 %v275
        %v1184 = vpop.f32.mrb[0].mxu0
        %v1185 = vadd.f32 %v1024, %v1184
        %v1186 = vpop.f32.mrb[0].mxu0
        %v1187 = vadd.f32 %v1026, %v1186
        %1188 = vmatprep.mubr.f32.mxu0 %v284
        %1189 = vmatmul.mubr.f32.gmra.mrb[0].mxu0 %v283
        %v1190 = vpop.f32.mrb[0].mxu0
        %v1191 = vadd.f32 %v1030, %v1190
        %v1192 = vpop.f32.mrb[0].mxu0
        %v1193 = vadd.f32 %v1032, %v1192
        %1194 = vmatprep.mubr.f32.mxu0 %v292
        %1195 = vmatmul.mubr.f32.gmra.mrb[0].mxu0 %v291
        %v1196 = vpop.f32.mrb[0].mxu0
        %v1197 = vadd.f32 %v1036, %v1196
        %v1198 = vpop.f32.mrb[0].mxu0
        %v1199 = vadd.f32 %v1038, %v1198
        %1200 = vmatprep.mubr.f32.mxu0 %v300
        %1201 = vmatmul.mubr.f32.gmra.mrb[0].mxu0 %v299
        %v1202 = vpop.f32.mrb[0].mxu0
        %v1203 = vadd.f32 %v1042, %v1202
        %v1204 = vpop.f32.mrb[0].mxu0
        %v1205 = vadd.f32 %v1044, %v1204
        %1206 = vmatprep.mubr.f32.mxu0 %v308
        %1207 = vmatmul.mubr.f32.gmra.mrb[0].mxu0 %v307
        %v1208 = vpop.f32.mrb[0].mxu0
        %v1209 = vadd.f32 %v1048, %v1208
        %v1210 = vpop.f32.mrb[0].mxu0
        %v1211 = vadd.f32 %v1050, %v1210
        %1212 = vmatprep.mubr.f32.mxu0 %v316
        %1213 = vmatmul.mubr.f32.gmra.mrb[0].mxu0 %v315
        %v1214 = vpop.f32.mrb[0].mxu0
        %v1215 = vadd.f32 %v1054, %v1214
        %v1216 = vpop.f32.mrb[0].mxu0
        %v1217 = vadd.f32 %v1056, %v1216
        %1218 = vmatprep.mubr.f32.mxu0 %v324
        %1219 = vmatmul.mubr.f32.gmra.mrb[0].mxu0 %v323
        %v1220 = vpop.f32.mrb[0].mxu0
        %v1221 = vadd.f32 %v1060, %v1220
        %v1222 = vpop.f32.mrb[0].mxu0
        %v1223 = vadd.f32 %v1062, %v1222
        %1224 = vdwg.mxu0
        %1225 = vst [vmem:[%s194] sm:$0xff] %v1131
        %1226 = vst [vmem:[%s194 + $0x8] sm:$0xff] %v1133
        %1227 = vst [vmem:[%s194 + $0x10] sm:$0xff] %v1137
        %1228 = vst [vmem:[%s194 + $0x18] sm:$0xff] %v1139
        %1229 = vst [vmem:[%s194 + $0x20] sm:$0xff] %v1143
        %1230 = vst [vmem:[%s194 + $0x28] sm:$0xff] %v1145
        %1231 = vst [vmem:[%s194 + $0x30] sm:$0xff] %v1149
        %1232 = vst [vmem:[%s194 + $0x38] sm:$0xff] %v1151
        %1233 = vst [vmem:[%s194 + $0x40] sm:$0xff] %v1155
        %1234 = vst [vmem:[%s194 + $0x48] sm:$0xff] %v1157
        %1235 = vst [vmem:[%s194 + $0x50] sm:$0xff] %v1161
        %1236 = vst [vmem:[%s194 + $0x58] sm:$0xff] %v1163
        %1237 = vst [vmem:[%s194 + $0x60] sm:$0xff] %v1167
        %1238 = vst [vmem:[%s194 + $0x68] sm:$0xff] %v1169
        %1239 = vst [vmem:[%s194 + $0x70] sm:$0xff] %v1173
        %1240 = vst [vmem:[%s194 + $0x78] sm:$0xff] %v1175
        %1241 = vst [vmem:[%s194 + $0x80] sm:$0xff] %v1179
        %1242 = vst [vmem:[%s194 + $0x88] sm:$0xff] %v1181
        %1243 = vst [vmem:[%s194 + $0x90] sm:$0xff] %v1185
        %1244 = vst [vmem:[%s194 + $0x98] sm:$0xff] %v1187
        %1245 = vst [vmem:[%s194 + $0xa0] sm:$0xff] %v1191
        %1246 = vst [vmem:[%s194 + $0xa8] sm:$0xff] %v1193
        %1247 = vst [vmem:[%s194 + $0xb0] sm:$0xff] %v1197
        %1248 = vst [vmem:[%s194 + $0xb8] sm:$0xff] %v1199
        %1249 = vst [vmem:[%s194 + $0xc0] sm:$0xff] %v1203
        %1250 = vst [vmem:[%s194 + $0xc8] sm:$0xff] %v1205
        %1251 = vst [vmem:[%s194 + $0xd0] sm:$0xff] %v1209
        %1252 = vst [vmem:[%s194 + $0xd8] sm:$0xff] %v1211
        %1253 = vst [vmem:[%s194 + $0xe0] sm:$0xff] %v1215
        %1254 = vst [vmem:[%s194 + $0xe8] sm:$0xff] %v1217
        %1255 = vst [vmem:[%s194 + $0xf0] sm:$0xff] %v1221
        %1256 = vst [vmem:[%s194 + $0xf8] sm:$0xff] %v1223
        %s1257 = sand.u32 %s91, 1
        %s1258 = scalar_lea.sflag [#allocation4], %s1257
        %s1259 = sand.u32 %s91, 1
        %s1260 = smul.addr %s1259, 256
        %s1261 = scalar_lea.vmem [#allocation7], %s1260
        // Predicated region
        $region37: #{tpu_custom_call.1} parent=27 // pred_check
          %p1262 = pneg %p101
        $region38: #{tpu_custom_call.1} parent=27 // pred_check_branch
          %1264 = sbr.rel (%p1262) target = $region40
        $region39: #{tpu_custom_call.1} parent=27 // pred_region
          %s1265 = smul.u32 2, %s25
          %s1267 = ssub.s32 4096, 4096
          %1268 = vsyncadd %s1258, %s1267
          %s1269 = smul.addr %s24, 32
          %s1270 = sadd.s32 %s1265, %s1269
          %s1271 = smul.addr %s1270, 128
          %s1272 = scalar_lea.hbm %s2, %s1271
          %s1273 = sshll.u32 %s1261, 4
          %s1274 = int_to_ptr.vmem [resolvable:$true] %s1273
          %1279 = dma.vmem_to_hbm [thread:$0]  %s1274, 4096, %s1272, %s1258, 256, 256, 16
        $region40: #{tpu_custom_call.1} parent=27 // pred_fallthru
          _
      $region28: #{tpu_custom_call.1} parent=5 // pred_fallthru
        _
      %p1280 = scmp.le.s32.totalorder 2, %s15
      // Predicated region
      $region41: #{tpu_custom_call.1} parent=5 // pred_check
        %p1281 = pneg %p1280
      $region42: #{tpu_custom_call.1} parent=5 // pred_check_branch
        %1283 = sbr.rel (%p1281) target = $region44
      $region43: #{tpu_custom_call.1} parent=5 // pred_region
        %s1284 = ssub.s32 %s15, 2
        // Predicated region
        $region45: #{tpu_custom_call.1} parent=43 // pred_check
          %p1285 = pneg %p107
        $region46: #{tpu_custom_call.1} parent=43 // pred_check_branch
          %1287 = sbr.rel (%p1285) target = $region48
        $region47: #{tpu_custom_call.1} parent=43 // pred_region
          %s1288 = sand.u32 %s92, 1
          %s1289 = scalar_lea.sflag [#allocation4], %s1288
          %s1290 = sand.u32 %s92, 1
          %s1291 = smul.addr %s1290, 256
          %s1292 = scalar_lea.vmem [#allocation7], %s1291
          %1293 = dma.done %s1289, 4096
        $region48: #{tpu_custom_call.1} parent=43 // pred_fallthru
          _
      $region44: #{tpu_custom_call.1} parent=5 // pred_fallthru
        _
    $region6: #{tpu_custom_call.1} parent=1 // loop_footer
      %s19 = sadd.s32 1, %s15
    $region7: #{tpu_custom_call.1} parent=1 // loop_footer_branch
      %14 = sbr.rel target = $region3
    $region8: #{tpu_custom_call.1} parent=1 // loop_exit
      _
    %1294 = vsyncpa [#allocation3], 1
    %s1295 = scalar_lea.sflag [#allocation3], 1
    %1296 = vsyncpa %s1295, 1
    %1297 = vsyncpa [#allocation6], 1
    %s1298 = scalar_lea.sflag [#allocation6], 1
    %1299 = vsyncpa %s1298, 1
    %1300 = vsyncpa [#allocation4], 1
    %s1301 = scalar_lea.sflag [#allocation4], 1
    %1302 = vsyncpa %s1301, 1

</llo_original>
